<compile_context>
chip_gen: v7x
topology: tpu7x:2x2x1
jax: 0.10.0
libtpu: 0.0.40
codegen_flags: <defaults>
</compile_context>

<pallas_src>
import functools

import jax
import jax.numpy as jnp
from jax.experimental import pallas as pl
from jax.experimental.pallas import tpu as pltpu


_VPU_MAX_C = 16                            # 1x1 conv on the VPU up to here, MXU above
_FUSED_VMEM_BUDGET = 40 * 1024 * 1024      # 2x(in)+2x(out) buffers + ~3 f32 slab temps
_VMEM_LIMIT = 48 * 1024 * 1024             # <= v7x's 64 MiB physical VMEM, with headroom


def _sigmoid_f32(v):
    # Plain exp + divide: stays numerically close to jax.nn.sigmoid (f32 gates).
    return 1.0 / (1.0 + jnp.exp(-v))


def _conv1x1(x, w_ref, b_ref, *, use_mxu):
    """sSE 1x1 conv over channels of a (C, L) tile -> f32 (C, L).

    use_mxu=False (C <= _VPU_MAX_C): unrolled sum of (C,1)*(1,L) broadcast FMAs,
    accumulated as a full (C, L) value (no per-row slices, no concatenate).
    use_mxu=True: one (C,C)@(C,L) MXU matmul fed in the activation dtype with an
    f32 accumulator (weight is cast once in the wrapper, never per block).
    """
    c = x.shape[0]
    if use_mxu:
        return jnp.dot(w_ref[...], x, preferred_element_type=jnp.float32) + b_ref[...]
    xf = x.astype(jnp.float32)
    acc = jnp.zeros(xf.shape, jnp.float32)
    for ci in range(c):                                   # static unroll, C <= 16
        acc = acc + w_ref[:, ci:ci + 1] * xf[ci:ci + 1, :]   # (C,1)*(1,L) -> (C,L)
    return acc + b_ref[...]


def _scse_fused_kernel(x_ref, w_ref, b_ref, w1t_ref, b1_ref, w2_ref, b2_ref,
                       o_ref, *, inv_hw, use_mxu):
    """Fully fused SCSE for one batch element's resident (C, HW) slab.

    x_ref: (C, HW) activation dtype.  w_ref: (C, C) conv weight.  b_ref: (C, 1) f32.
    w1t_ref: (C, mid) f32 (= W1^T).  b1_ref: (1, mid) f32.  w2_ref: (C, mid) f32.
    b2_ref: (C, 1) f32.  All gate math in f32; the final multiply stays in x.dtype.
    """
    x = x_ref[...]                                                        # (C, HW)

    # --- cSE: global average pool + 2-layer MLP + sigmoid (tiny, VPU/XLU only) ---
    pooled = jnp.sum(x.astype(jnp.float32), axis=-1, keepdims=True) * inv_hw   # (C, 1)
    h = jnp.maximum(
        jnp.sum(w1t_ref[...] * pooled, axis=0, keepdims=True) + b1_ref[...], 0.0)  # (1, mid)
    z = jnp.sum(w2_ref[...] * h, axis=-1, keepdims=True) + b2_ref[...]             # (C, 1)
    cgate = _sigmoid_f32(z)                                                         # (C, 1)

    # --- sSE: 1x1 conv + sigmoid; combine gates and apply on the whole tile ------
    conv = _conv1x1(x, w_ref, b_ref, use_mxu=use_mxu)                    # (C, HW) f32
    gate = _sigmoid_f32(conv) + cgate                                    # (C, HW) f32
    o_ref[...] = (x * gate.astype(x.dtype)).astype(o_ref.dtype)


def _scse_tiled_kernel(x_ref, w_ref, b_ref, cgate_ref, o_ref, *, use_mxu):
    """Lane-tiled fallback (cSE gate precomputed in the wrapper).

    x_ref: (C, L) tile.  cgate_ref: (C, 1) f32 cSE gate of this batch element.
    """
    x = x_ref[...]
    conv = _conv1x1(x, w_ref, b_ref, use_mxu=use_mxu)
    gate = _sigmoid_f32(conv) + cgate_ref[...]
    o_ref[...] = (x * gate.astype(x.dtype)).astype(o_ref.dtype)


def _cse_channel_gate(x, w1, b1, w2, b2):
    """cSE gate (N, C) f32: global average pool + 2-layer MLP + sigmoid (fallback)."""
    n, c, hh, ww = x.shape
    pooled = jnp.mean(x.astype(jnp.float32).reshape(n, c, hh * ww), axis=-1)
    hidden = jax.nn.relu(pooled @ w1.astype(jnp.float32).T + b1.astype(jnp.float32))
    z = hidden @ w2.astype(jnp.float32).T + b2.astype(jnp.float32)
    return jax.nn.sigmoid(z)


def _pick_hw_tile(hw, c, itemsize, target_bytes, n_batch):
    """Lane tile (multiple of 128, ~target_bytes of activation data) for the
    tiled fallback.  Prefers exact divisors of hw (full, unmasked blocks) and
    keeps >= ~8 total grid steps so the two v7x TensorCores and the pipeline
    have work.  Never requests a full-extent block that could blow VMEM."""
    if hw <= 128:
        return hw

    def snap(t):
        t = max(128, (t // 128) * 128)
        if hw % 128 == 0:                       # prefer an exact divisor of hw
            while t > 128 and hw % t != 0:
                t -= 128
        return t

    lanes_cap = max(128, target_bytes // max(1, c * itemsize))
    tile = snap(min(hw, lanes_cap))
    while tile > 128 and n_batch * (-(-hw // tile)) < 8:
        tile = snap(tile // 2)
    return tile


def scse_forward(x, sse_w, sse_b, cse_w1, cse_b1, cse_w2, cse_b2, *,
                 target_block_bytes=4 * 1024 * 1024,
                 donate_input=False, force_tiled=False):
    """SCSE forward.  x: (N, C, H, W) NCHW.
    sse_w: (C, C) squeezed Conv2d(C, C, 1) weight; sse_b: (C,).
    cse_w1: (C//r, C); cse_b1: (C//r,); cse_w2: (C, C//r); cse_b2: (C,).
    """
    N, C, H, W = x.shape
    HW = H * W
    mid = cse_w1.shape[0]
    x_view = x.reshape(N, C, HW)                  # free reshape, stays NCHW

    use_mxu = C > _VPU_MAX_C
    # Loop-invariant conv params, prepared once: activation dtype for the MXU path
    # (native bf16 MXU on v6e/v7x), f32 for the vectorized VPU path.
    w_conv = sse_w.reshape(C, C).astype(x.dtype if use_mxu else jnp.float32)
    b_conv = sse_b.reshape(C, 1).astype(jnp.float32)

    cost = pl.CostEstimate(
        flops=2 * N * C * C * HW + 6 * N * C * HW,
        transcendentals=N * C * HW + N * C,
        bytes_accessed=2 * N * C * HW * x.dtype.itemsize,
    )
    extra = {"input_output_aliases": {0: 0}} if donate_input else {}

    # Fuse the cSE pool+MLP whenever one (C, HW) slab (double-buffered in+out plus
    # ~3 f32 slab temporaries) fits the VMEM budget -> single HBM read of x.
    slab_bytes = C * HW * x.dtype.itemsize
    fused_vmem_est = 4 * slab_bytes + 3 * C * HW * 4
    use_fused = (not force_tiled) and fused_vmem_est <= _FUSED_VMEM_BUDGET

    if use_fused:
        kernel = functools.partial(_scse_fused_kernel,
                                   inv_hw=1.0 / float(HW), use_mxu=use_mxu)
        data_spec = pl.BlockSpec((None, C, HW), lambda n: (n, 0, 0))

        def param_spec(shape):
            return pl.BlockSpec(shape, lambda n: (0, 0))

        out = pl.pallas_call(
            kernel,
            out_shape=jax.ShapeDtypeStruct((N, C, HW), x.dtype),
            grid_spec=pltpu.PrefetchScalarGridSpec(
                num_scalar_prefetch=0,
                grid=(N,),
                in_specs=[
                    data_spec,
                    param_spec((C, C)),        # conv weight
                    param_spec((C, 1)),        # conv bias
                    param_spec((C, mid)),      # W1^T
                    param_spec((1, mid)),      # b1
                    param_spec((C, mid)),      # W2
                    param_spec((C, 1)),        # b2
                ],
                out_specs=data_spec),
            compiler_params=pltpu.CompilerParams(
                dimension_semantics=("parallel",),        # megacore on v7x when N >= 2
                vmem_limit_bytes=_VMEM_LIMIT),
            cost_estimate=cost,
            **extra,
        )(x_view, w_conv, b_conv,
          cse_w1.astype(jnp.float32).T,              # (C, mid)
          cse_b1.astype(jnp.float32).reshape(1, mid),
          cse_w2.astype(jnp.float32),                # (C, mid)
          cse_b2.astype(jnp.float32).reshape(C, 1))
    else:
        # TODO(synk): slab too large for VMEM -- the cSE pool remains a separate
        # plain-JAX pass over x here (fusing it needs a two-sweep carry structure).
        cgate = _cse_channel_gate(x, cse_w1, cse_b1, cse_w2, cse_b2).reshape(N, C, 1)
        L = _pick_hw_tile(HW, C, x.dtype.itemsize, target_block_bytes, N)
        grid = (N, pl.cdiv(HW, L))
        kernel = functools.partial(_scse_tiled_kernel, use_mxu=use_mxu)
        data_spec = pl.BlockSpec((None, C, L), lambda n, j: (n, 0, j))
        out = pl.pallas_call(
            kernel,
            out_shape=jax.ShapeDtypeStruct((N, C, HW), x.dtype),
            grid_spec=pltpu.PrefetchScalarGridSpec(
                num_scalar_prefetch=0,
                grid=grid,
                in_specs=[
                    data_spec,
                    pl.BlockSpec((C, C), lambda n, j: (0, 0)),           # conv weight
                    pl.BlockSpec((C, 1), lambda n, j: (0, 0)),           # conv bias
                    pl.BlockSpec((None, C, 1), lambda n, j: (n, 0, 0)),  # cSE gate
                ],
                out_specs=data_spec),
            compiler_params=pltpu.CompilerParams(
                dimension_semantics=("parallel", "parallel"),
                vmem_limit_bytes=_VMEM_LIMIT),
            cost_estimate=cost,
            **extra,
        )(x_view, w_conv, b_conv, cgate)

    return out.reshape(N, C, H, W)


def scse_reference(x, sse_w, sse_b, cse_w1, cse_b1, cse_w2, cse_b2):
    """Pure-JAX mirror of the PyTorch SCSE forward (exact-f32 conv)."""
    cgate = _cse_channel_gate(x, cse_w1, cse_b1, cse_w2, cse_b2)       # (N, C)
    cse = x * cgate[:, :, None, None]
    conv = jnp.einsum("oc,nchw->nohw", sse_w, x,
                      precision=jax.lax.Precision.HIGHEST) + sse_b[None, :, None, None]
    sse = x * jax.nn.sigmoid(conv)
    return cse + sse


def _init_params(key, C, r):
    ks = jax.random.split(key, 6)
    mid = max(1, C // r)
    cb = float(1.0 / (C ** 0.5))                  # Conv2d(C, C, 1): fan_in = C
    sse_w = jax.random.uniform(ks[0], (C, C), minval=-cb, maxval=cb, dtype=jnp.float32)
    sse_b = jax.random.uniform(ks[1], (C,), minval=-cb, maxval=cb, dtype=jnp.float32)
    lb1 = float(1.0 / (C ** 0.5))                 # Linear(C -> mid)
    cse_w1 = jax.random.uniform(ks[2], (mid, C), minval=-lb1, maxval=lb1, dtype=jnp.float32)
    cse_b1 = jax.random.uniform(ks[3], (mid,), minval=-lb1, maxval=lb1, dtype=jnp.float32)
    lb2 = float(1.0 / (mid ** 0.5))               # Linear(mid -> C)
    cse_w2 = jax.random.uniform(ks[4], (C, mid), minval=-lb2, maxval=lb2, dtype=jnp.float32)
    cse_b2 = jax.random.uniform(ks[5], (C,), minval=-lb2, maxval=lb2, dtype=jnp.float32)
    return sse_w, sse_b, cse_w1, cse_b1, cse_w2, cse_b2


if __name__ == "__main__":
    # --- small-C config: fused path (in-kernel cSE pool+MLP), vectorized VPU conv --
    N, C, H, W, r = 2, 4, 16, 16, 2
    key = jax.random.PRNGKey(0)
    kx, kp = jax.random.split(key)
    x = jax.random.normal(kx, (N, C, H, W), dtype=jnp.float32)
    params = _init_params(kp, C, r)

    out = jax.block_until_ready(scse_forward(x, *params))
    ref = scse_reference(x, *params)
    assert out.shape == (N, C, H, W)
    # in-kernel pooling reduction order differs slightly from jnp.mean -> 1e-4 tol
    assert jnp.allclose(out, ref, atol=1e-4, rtol=1e-4), "fused small-C SCSE mismatch"

    # --- wider-C config: fused path with MXU conv (tolerance covers MXU f32 passes)
    N2, C2, H2, W2, r2 = 2, 32, 16, 16, 16
    kx2, kp2 = jax.random.split(jax.random.PRNGKey(1))
    x2 = jax.random.normal(kx2, (N2, C2, H2, W2), dtype=jnp.float32)
    params2 = _init_params(kp2, C2, r2)

    out2 = jax.block_until_ready(scse_forward(x2, *params2))
    ref2 = scse_reference(x2, *params2)
    assert out2.shape == (N2, C2, H2, W2)
    assert jnp.allclose(out2, ref2, atol=2e-3, rtol=2e-3), "fused MXU-path SCSE mismatch"

    # --- tiled fallback path (forced small blocks): wrapper cSE gate + lane tiling --
    out3 = jax.block_until_ready(
        scse_forward(x, *params, force_tiled=True, target_block_bytes=1024))
    assert jnp.allclose(out3, ref, atol=1e-4, rtol=1e-4), "tiled-path SCSE mismatch"

    print("KERNEL_OK")
</pallas_src>

<mosaic_0001>
module attributes {stable_mosaic.version = 11 : i64} {
  func.func @_scse_fused_kernel(%arg0: i32, %arg1: memref<1x4x256xf32, #tpu.memory_space<vmem>>, %arg2: memref<4x4xf32, #tpu.memory_space<vmem>>, %arg3: memref<4x1xf32, #tpu.memory_space<vmem>>, %arg4: memref<4x2xf32, #tpu.memory_space<vmem>>, %arg5: memref<1x2xf32, #tpu.memory_space<vmem>>, %arg6: memref<4x2xf32, #tpu.memory_space<vmem>>, %arg7: memref<4x1xf32, #tpu.memory_space<vmem>>, %arg8: memref<1x4x256xf32, #tpu.memory_space<vmem>>) attributes {dimension_semantics = [#tpu.dimension_semantics<parallel>], iteration_bounds = array<i64: 2>, scalar_prefetch = 0 : i64, scratch_operands = 0 : i64, tpu.core_type = #tpu.core_type<tc>, window_params = [{transform_indices = @transform_0, window_bounds = array<i64: 1, 4, 256>}, {pipeline_mode = #tpu.pipeline_mode<synchronous>, transform_indices = @transform_1, window_bounds = array<i64: 4, 4>}, {pipeline_mode = #tpu.pipeline_mode<synchronous>, transform_indices = @transform_2, window_bounds = array<i64: 4, 1>}, {pipeline_mode = #tpu.pipeline_mode<synchronous>, transform_indices = @transform_3, window_bounds = array<i64: 4, 2>}, {pipeline_mode = #tpu.pipeline_mode<synchronous>, transform_indices = @transform_4, window_bounds = array<i64: 1, 2>}, {pipeline_mode = #tpu.pipeline_mode<synchronous>, transform_indices = @transform_5, window_bounds = array<i64: 4, 2>}, {pipeline_mode = #tpu.pipeline_mode<synchronous>, transform_indices = @transform_6, window_bounds = array<i64: 4, 1>}, {transform_indices = @transform_7, window_bounds = array<i64: 1, 4, 256>}]} {
    %c0 = arith.constant 0 : index
    %c0_0 = arith.constant 0 : index
    %c0_1 = arith.constant 0 : index
    %0 = vector.load %arg1[%c0, %c0_0, %c0_1] : memref<1x4x256xf32, #tpu.memory_space<vmem>>, vector<1x4x256xf32>
    %1 = vector.shape_cast %0 : vector<1x4x256xf32> to vector<4x256xf32>
    %cst = arith.constant dense<0.000000e+00> : vector<4xf32>
    %2 = vector.multi_reduction <add>, %1, %cst [1] : vector<4x256xf32> to vector<4xf32>
    %3 = vector.shape_cast %2 : vector<4xf32> to vector<4x1xf32>
    %cst_2 = arith.constant 3.906250e-03 : f32
    %4 = vector.broadcast %cst_2 : f32 to vector<4x1xf32>
    %5 = arith.mulf %3, %4 : vector<4x1xf32>
    %c0_3 = arith.constant 0 : index
    %c0_4 = arith.constant 0 : index
    %6 = vector.load %arg4[%c0_3, %c0_4] : memref<4x2xf32, #tpu.memory_space<vmem>>, vector<4x2xf32>
    %7 = vector.broadcast %5 : vector<4x1xf32> to vector<4x2xf32>
    %8 = arith.mulf %6, %7 : vector<4x2xf32>
    %cst_5 = arith.constant dense<0.000000e+00> : vector<2xf32>
    %9 = vector.multi_reduction <add>, %8, %cst_5 [0] : vector<4x2xf32> to vector<2xf32>
    %10 = vector.shape_cast %9 : vector<2xf32> to vector<1x2xf32>
    %c0_6 = arith.constant 0 : index
    %c0_7 = arith.constant 0 : index
    %11 = vector.load %arg5[%c0_6, %c0_7] : memref<1x2xf32, #tpu.memory_space<vmem>>, vector<1x2xf32>
    %12 = arith.addf %10, %11 : vector<1x2xf32>
    %cst_8 = arith.constant 0.000000e+00 : f32
    %13 = vector.broadcast %cst_8 : f32 to vector<1x2xf32>
    %14 = arith.maximumf %12, %13 : vector<1x2xf32>
    %c0_9 = arith.constant 0 : index
    %c0_10 = arith.constant 0 : index
    %15 = vector.load %arg6[%c0_9, %c0_10] : memref<4x2xf32, #tpu.memory_space<vmem>>, vector<4x2xf32>
    %16 = vector.broadcast %14 : vector<1x2xf32> to vector<4x2xf32>
    %17 = arith.mulf %15, %16 : vector<4x2xf32>
    %cst_11 = arith.constant dense<0.000000e+00> : vector<4xf32>
    %18 = vector.multi_reduction <add>, %17, %cst_11 [1] : vector<4x2xf32> to vector<4xf32>
    %19 = vector.shape_cast %18 : vector<4xf32> to vector<4x1xf32>
    %c0_12 = arith.constant 0 : index
    %c0_13 = arith.constant 0 : index
    %20 = vector.load %arg7[%c0_12, %c0_13] : memref<4x1xf32, #tpu.memory_space<vmem>>, vector<4x1xf32>
    %21 = arith.addf %19, %20 : vector<4x1xf32>
    %cst_14 = arith.constant 0.000000e+00 : f32
    %22 = vector.broadcast %cst_14 : f32 to vector<4x1xf32>
    %23 = arith.subf %22, %21 : vector<4x1xf32>
    %24 = math.exp %23 : vector<4x1xf32>
    %cst_15 = arith.constant 1.000000e+00 : f32
    %25 = vector.broadcast %cst_15 : f32 to vector<4x1xf32>
    %26 = arith.addf %25, %24 : vector<4x1xf32>
    %cst_16 = arith.constant 1.000000e+00 : f32
    %27 = vector.broadcast %cst_16 : f32 to vector<4x1xf32>
    %28 = arith.divf %27, %26 : vector<4x1xf32>
    %cst_17 = arith.constant 0.000000e+00 : f32
    %29 = vector.broadcast %cst_17 : f32 to vector<4x256xf32>
    %c0_18 = arith.constant 0 : index
    %c0_19 = arith.constant 0 : index
    %30 = vector.load %arg2[%c0_18, %c0_19] : memref<4x4xf32, #tpu.memory_space<vmem>>, vector<4x1xf32>
    %31 = vector.extract_strided_slice %1 {offsets = [0, 0], sizes = [1, 256], strides = [1, 1]} : vector<4x256xf32> to vector<1x256xf32>
    %32 = vector.broadcast %30 : vector<4x1xf32> to vector<4x256xf32>
    %33 = vector.broadcast %31 : vector<1x256xf32> to vector<4x256xf32>
    %34 = arith.mulf %32, %33 : vector<4x256xf32>
    %35 = arith.addf %29, %34 : vector<4x256xf32>
    %c0_20 = arith.constant 0 : index
    %c1 = arith.constant 1 : index
    %36 = vector.load %arg2[%c0_20, %c1] : memref<4x4xf32, #tpu.memory_space<vmem>>, vector<4x1xf32>
    %37 = vector.extract_strided_slice %1 {offsets = [1, 0], sizes = [1, 256], strides = [1, 1]} : vector<4x256xf32> to vector<1x256xf32>
    %38 = vector.broadcast %36 : vector<4x1xf32> to vector<4x256xf32>
    %39 = vector.broadcast %37 : vector<1x256xf32> to vector<4x256xf32>
    %40 = arith.mulf %38, %39 : vector<4x256xf32>
    %41 = arith.addf %35, %40 : vector<4x256xf32>
    %c0_21 = arith.constant 0 : index
    %c2 = arith.constant 2 : index
    %42 = vector.load %arg2[%c0_21, %c2] : memref<4x4xf32, #tpu.memory_space<vmem>>, vector<4x1xf32>
    %43 = vector.extract_strided_slice %1 {offsets = [2, 0], sizes = [1, 256], strides = [1, 1]} : vector<4x256xf32> to vector<1x256xf32>
    %44 = vector.broadcast %42 : vector<4x1xf32> to vector<4x256xf32>
    %45 = vector.broadcast %43 : vector<1x256xf32> to vector<4x256xf32>
    %46 = arith.mulf %44, %45 : vector<4x256xf32>
    %47 = arith.addf %41, %46 : vector<4x256xf32>
    %c0_22 = arith.constant 0 : index
    %c3 = arith.constant 3 : index
    %48 = vector.load %arg2[%c0_22, %c3] : memref<4x4xf32, #tpu.memory_space<vmem>>, vector<4x1xf32>
    %49 = vector.extract_strided_slice %1 {offsets = [3, 0], sizes = [1, 256], strides = [1, 1]} : vector<4x256xf32> to vector<1x256xf32>
    %50 = vector.broadcast %48 : vector<4x1xf32> to vector<4x256xf32>
    %51 = vector.broadcast %49 : vector<1x256xf32> to vector<4x256xf32>
    %52 = arith.mulf %50, %51 : vector<4x256xf32>
    %53 = arith.addf %47, %52 : vector<4x256xf32>
    %c0_23 = arith.constant 0 : index
    %c0_24 = arith.constant 0 : index
    %54 = vector.load %arg3[%c0_23, %c0_24] : memref<4x1xf32, #tpu.memory_space<vmem>>, vector<4x1xf32>
    %55 = vector.broadcast %54 : vector<4x1xf32> to vector<4x256xf32>
    %56 = arith.addf %53, %55 : vector<4x256xf32>
    %cst_25 = arith.constant 0.000000e+00 : f32
    %57 = vector.broadcast %cst_25 : f32 to vector<4x256xf32>
    %58 = arith.subf %57, %56 : vector<4x256xf32>
    %59 = math.exp %58 : vector<4x256xf32>
    %cst_26 = arith.constant 1.000000e+00 : f32
    %60 = vector.broadcast %cst_26 : f32 to vector<4x256xf32>
    %61 = arith.addf %60, %59 : vector<4x256xf32>
    %cst_27 = arith.constant 1.000000e+00 : f32
    %62 = vector.broadcast %cst_27 : f32 to vector<4x256xf32>
    %63 = arith.divf %62, %61 : vector<4x256xf32>
    %64 = vector.broadcast %28 : vector<4x1xf32> to vector<4x256xf32>
    %65 = arith.addf %63, %64 : vector<4x256xf32>
    %66 = arith.mulf %1, %65 : vector<4x256xf32>
    %c0_28 = arith.constant 0 : index
    %c0_29 = arith.constant 0 : index
    %c0_30 = arith.constant 0 : index
    %67 = vector.load %arg8[%c0_28, %c0_29, %c0_30] : memref<1x4x256xf32, #tpu.memory_space<vmem>>, vector<1x4x256xf32>
    %68 = vector.shape_cast %67 : vector<1x4x256xf32> to vector<4x256xf32>
    %69 = vector.shape_cast %66 : vector<4x256xf32> to vector<1x4x256xf32>
    tpu.vector_store %arg8[%c0_28, %c0_29, %c0_30], %69 {strides = array<i32>} : memref<1x4x256xf32, #tpu.memory_space<vmem>>, vector<1x4x256xf32>,
    return
  }
  func.func @transform_0(%arg0: i32) -> (i32, i32, i32) {
    %c0_i32 = arith.constant 0 : i32
    %c0_i32_0 = arith.constant 0 : i32
    %c0_i32_1 = arith.constant 0 : i32
    return %arg0, %c0_i32, %c0_i32_0 : i32, i32, i32
  }
  func.func @transform_1(%arg0: i32) -> (i32, i32) {
    %c0_i32 = arith.constant 0 : i32
    %c0_i32_0 = arith.constant 0 : i32
    %c0_i32_1 = arith.constant 0 : i32
    return %c0_i32, %c0_i32_0 : i32, i32
  }
  func.func @transform_2(%arg0: i32) -> (i32, i32) {
    %c0_i32 = arith.constant 0 : i32
    %c0_i32_0 = arith.constant 0 : i32
    %c0_i32_1 = arith.constant 0 : i32
    return %c0_i32, %c0_i32_0 : i32, i32
  }
  func.func @transform_3(%arg0: i32) -> (i32, i32) {
    %c0_i32 = arith.constant 0 : i32
    %c0_i32_0 = arith.constant 0 : i32
    %c0_i32_1 = arith.constant 0 : i32
    return %c0_i32, %c0_i32_0 : i32, i32
  }
  func.func @transform_4(%arg0: i32) -> (i32, i32) {
    %c0_i32 = arith.constant 0 : i32
    %c0_i32_0 = arith.constant 0 : i32
    %c0_i32_1 = arith.constant 0 : i32
    return %c0_i32, %c0_i32_0 : i32, i32
  }
  func.func @transform_5(%arg0: i32) -> (i32, i32) {
    %c0_i32 = arith.constant 0 : i32
    %c0_i32_0 = arith.constant 0 : i32
    %c0_i32_1 = arith.constant 0 : i32
    return %c0_i32, %c0_i32_0 : i32, i32
  }
  func.func @transform_6(%arg0: i32) -> (i32, i32) {
    %c0_i32 = arith.constant 0 : i32
    %c0_i32_0 = arith.constant 0 : i32
    %c0_i32_1 = arith.constant 0 : i32
    return %c0_i32, %c0_i32_0 : i32, i32
  }
  func.func @transform_7(%arg0: i32) -> (i32, i32, i32) {
    %c0_i32 = arith.constant 0 : i32
    %c0_i32_0 = arith.constant 0 : i32
    %c0_i32_1 = arith.constant 0 : i32
    return %arg0, %c0_i32, %c0_i32_0 : i32, i32, i32
  }
}

</mosaic_0001>

<llo_original>
// kernel: tpu_custom_call.1
$region0: #{tpu_custom_call.1}
  #allocation0 [shape = 'u32[]', space=smem, size = 0x4, offset = 0x4, fixed_abs, tag = 'smem constant byte address 0x4 - core index']
  #allocation1 [shape = 'u32[144,128]{1,0:T(1,128)}', space=vmem, size = 0x12000, scoped, tag = 'internal scratch']
  %s0 = inlined_call_operand.vmem [shape: f32[2,4,256], index: 0, kind: input, shape index: {}]
  %s1 = inlined_call_operand.vmem [shape: f32[4,4], index: 1, kind: input, shape index: {}]
  %s2 = inlined_call_operand.vmem [shape: f32[4,1], index: 2, kind: input, shape index: {}]
  %s3 = inlined_call_operand.vmem [shape: f32[4,2], index: 3, kind: input, shape index: {}]
  %s4 = inlined_call_operand.vmem [shape: f32[1,2], index: 4, kind: input, shape index: {}]
  %s5 = inlined_call_operand.vmem [shape: f32[4,2], index: 5, kind: input, shape index: {}]
  %s6 = inlined_call_operand.vmem [shape: f32[4,1], index: 6, kind: input, shape index: {}]
  %s7 = inlined_call_operand.hbm [shape: f32[2,4,256], index: 7, kind: output, shape index: {}]
  %s8 = sld [smem:[#allocation0]]
  $region61: #{tpu_custom_call.1} parent=0
    _
  %s10 = ssub.s32 1, %s8
  %s11 = scalar_select 0, %s10, %s8
  $region1: #{tpu_custom_call.1} parent=0
    #allocation2 [shape = 'u8[8192]{0}', space=vmem, size = 0x2000, scoped, tag = 'output window, operand 0']
    #allocation3 [shape = 's32[2]{0}', space=sflag, size = 0x8, scoped, tag = 'scoped memory for tpu_custom_call.1']
    %12 = vsyncpa [#allocation3], 0
    %s13 = scalar_lea.sflag [#allocation3], 1
    %14 = vsyncpa %s13, 0
    loop: start=0, step=1, limit=4
    $region2: #{tpu_custom_call.1} parent=1 // loop_pre_header
      _
    $region3: #{tpu_custom_call.1} parent=1 // loop_header
      %s16 = sphi 0, %s20
      %p17 = scmp.ge.s32.totalorder %s16, 4
      %s26 = sphi 0, %s28
      %s29 = sphi 0, %s26
      %s30 = sphi 0, %s29
      %s46 = sphi 0, %s30
      %s50 = sphi 0, %s50
      %s52 = sphi 0, %s50
      %s53 = sphi 0, %s52
      %s67 = sphi 0, %s53
      %s71 = sphi 0, %s71
      %s73 = sphi 0, %s71
      %s74 = sphi 0, %s73
      %s88 = sphi 0, %s74
      %s92 = sphi 0, %s92
      %s94 = sphi 0, %s92
      %s95 = sphi 0, %s94
      %s109 = sphi 0, %s95
      %s113 = sphi 0, %s113
      %s115 = sphi 0, %s113
      %s116 = sphi 0, %s115
      %s130 = sphi 0, %s116
      %s134 = sphi 0, %s134
      %s136 = sphi 0, %s134
      %s137 = sphi 0, %s136
      %s151 = sphi 0, %s137
      %s155 = sphi 0, %s155
      %s157 = sphi 0, %s155
      %s158 = sphi 0, %s157
      %s172 = sphi 0, %s158
      %s178 = sphi 0, %s180
      %s181 = sphi 0, %s178
      %s182 = sphi 0, %s181
      %s198 = sphi 0, %s182
    $region4: #{tpu_custom_call.1} parent=1 // loop_header_branch
      %19 = sbr.rel (%p17) target = $region8
    $region5: #{tpu_custom_call.1} parent=1 // loop_body
      %s21 = ssub.s32 %s16, 1
      %s22 = ssub.s32 %s16, 2
      %s23 = sadd.s32 %s16, 1
      %s24 = ssub.s32 %s16, %s23
      %p25 = scmp.eq.s32.totalorder %s24, 0
      %s27 = sadd.s32 %s26, 1
      %s28 = scalar_select %p25, %s26, %s27
      %p31 = pneg %p25
      %p32 = scmp.eq.s32.totalorder %s16, 1
      %p33 = por %p31, %p32
      %p34 = scmp.ne.s32.totalorder %s26, %s29
      %p35 = scmp.eq.s32.totalorder %s16, 0
      %p36 = por %p34, %p35
      %p37 = scmp.ne.s32.totalorder %s26, %s29
      %p38 = scmp.eq.s32.totalorder %s21, 1
      %p39 = por %p37, %p38
      %p40 = scmp.ne.s32.totalorder %s29, %s30
      %p41 = scmp.eq.s32.totalorder %s21, 0
      %p42 = por %p40, %p41
      %p43 = scmp.ne.s32.totalorder %s29, %s30
      %p44 = scmp.eq.s32.totalorder %s22, 1
      %p45 = por %p43, %p44
      %p47 = scmp.ne.s32.totalorder %s30, %s46
      %p48 = scmp.eq.s32.totalorder %s22, 0
      %p49 = por %p47, %p48
      %s51 = sadd.s32 %s50, 1
      %p54 = scmp.eq.s32.totalorder %s16, 1
      %p55 = scmp.ne.s32.totalorder %s50, %s52
      %p56 = scmp.eq.s32.totalorder %s16, 0
      %p57 = por %p55, %p56
      %p58 = scmp.ne.s32.totalorder %s50, %s52
      %p59 = scmp.eq.s32.totalorder %s21, 1
      %p60 = por %p58, %p59
      %p61 = scmp.ne.s32.totalorder %s52, %s53
      %p62 = scmp.eq.s32.totalorder %s21, 0
      %p63 = por %p61, %p62
      %p64 = scmp.ne.s32.totalorder %s52, %s53
      %p65 = scmp.eq.s32.totalorder %s22, 1
      %p66 = por %p64, %p65
      %p68 = scmp.ne.s32.totalorder %s53, %s67
      %p69 = scmp.eq.s32.totalorder %s22, 0
      %p70 = por %p68, %p69
      %s72 = sadd.s32 %s71, 1
      %p75 = scmp.eq.s32.totalorder %s16, 1
      %p76 = scmp.ne.s32.totalorder %s71, %s73
      %p77 = scmp.eq.s32.totalorder %s16, 0
      %p78 = por %p76, %p77
      %p79 = scmp.ne.s32.totalorder %s71, %s73
      %p80 = scmp.eq.s32.totalorder %s21, 1
      %p81 = por %p79, %p80
      %p82 = scmp.ne.s32.totalorder %s73, %s74
      %p83 = scmp.eq.s32.totalorder %s21, 0
      %p84 = por %p82, %p83
      %p85 = scmp.ne.s32.totalorder %s73, %s74
      %p86 = scmp.eq.s32.totalorder %s22, 1
      %p87 = por %p85, %p86
      %p89 = scmp.ne.s32.totalorder %s74, %s88
      %p90 = scmp.eq.s32.totalorder %s22, 0
      %p91 = por %p89, %p90
      %s93 = sadd.s32 %s92, 1
      %p96 = scmp.eq.s32.totalorder %s16, 1
      %p97 = scmp.ne.s32.totalorder %s92, %s94
      %p98 = scmp.eq.s32.totalorder %s16, 0
      %p99 = por %p97, %p98
      %p100 = scmp.ne.s32.totalorder %s92, %s94
      %p101 = scmp.eq.s32.totalorder %s21, 1
      %p102 = por %p100, %p101
      %p103 = scmp.ne.s32.totalorder %s94, %s95
      %p104 = scmp.eq.s32.totalorder %s21, 0
      %p105 = por %p103, %p104
      %p106 = scmp.ne.s32.totalorder %s94, %s95
      %p107 = scmp.eq.s32.totalorder %s22, 1
      %p108 = por %p106, %p107
      %p110 = scmp.ne.s32.totalorder %s95, %s109
      %p111 = scmp.eq.s32.totalorder %s22, 0
      %p112 = por %p110, %p111
      %s114 = sadd.s32 %s113, 1
      %p117 = scmp.eq.s32.totalorder %s16, 1
      %p118 = scmp.ne.s32.totalorder %s113, %s115
      %p119 = scmp.eq.s32.totalorder %s16, 0
      %p120 = por %p118, %p119
      %p121 = scmp.ne.s32.totalorder %s113, %s115
      %p122 = scmp.eq.s32.totalorder %s21, 1
      %p123 = por %p121, %p122
      %p124 = scmp.ne.s32.totalorder %s115, %s116
      %p125 = scmp.eq.s32.totalorder %s21, 0
      %p126 = por %p124, %p125
      %p127 = scmp.ne.s32.totalorder %s115, %s116
      %p128 = scmp.eq.s32.totalorder %s22, 1
      %p129 = por %p127, %p128
      %p131 = scmp.ne.s32.totalorder %s116, %s130
      %p132 = scmp.eq.s32.totalorder %s22, 0
      %p133 = por %p131, %p132
      %s135 = sadd.s32 %s134, 1
      %p138 = scmp.eq.s32.totalorder %s16, 1
      %p139 = scmp.ne.s32.totalorder %s134, %s136
      %p140 = scmp.eq.s32.totalorder %s16, 0
      %p141 = por %p139, %p140
      %p142 = scmp.ne.s32.totalorder %s134, %s136
      %p143 = scmp.eq.s32.totalorder %s21, 1
      %p144 = por %p142, %p143
      %p145 = scmp.ne.s32.totalorder %s136, %s137
      %p146 = scmp.eq.s32.totalorder %s21, 0
      %p147 = por %p145, %p146
      %p148 = scmp.ne.s32.totalorder %s136, %s137
      %p149 = scmp.eq.s32.totalorder %s22, 1
      %p150 = por %p148, %p149
      %p152 = scmp.ne.s32.totalorder %s137, %s151
      %p153 = scmp.eq.s32.totalorder %s22, 0
      %p154 = por %p152, %p153
      %s156 = sadd.s32 %s155, 1
      %p159 = scmp.eq.s32.totalorder %s16, 1
      %p160 = scmp.ne.s32.totalorder %s155, %s157
      %p161 = scmp.eq.s32.totalorder %s16, 0
      %p162 = por %p160, %p161
      %p163 = scmp.ne.s32.totalorder %s155, %s157
      %p164 = scmp.eq.s32.totalorder %s21, 1
      %p165 = por %p163, %p164
      %p166 = scmp.ne.s32.totalorder %s157, %s158
      %p167 = scmp.eq.s32.totalorder %s21, 0
      %p168 = por %p166, %p167
      %p169 = scmp.ne.s32.totalorder %s157, %s158
      %p170 = scmp.eq.s32.totalorder %s22, 1
      %p171 = por %p169, %p170
      %p173 = scmp.ne.s32.totalorder %s158, %s172
      %p174 = scmp.eq.s32.totalorder %s22, 0
      %p175 = por %p173, %p174
      %s176 = ssub.s32 %s16, %s23
      %p177 = scmp.eq.s32.totalorder %s176, 0
      %s179 = sadd.s32 %s178, 1
      %s180 = scalar_select %p177, %s178, %s179
      %p183 = pneg %p177
      %p184 = scmp.eq.s32.totalorder %s16, 1
      %p185 = por %p183, %p184
      %p186 = scmp.ne.s32.totalorder %s178, %s181
      %p187 = scmp.eq.s32.totalorder %s16, 0
      %p188 = por %p186, %p187
      %p189 = scmp.ne.s32.totalorder %s178, %s181
      %p190 = scmp.eq.s32.totalorder %s21, 1
      %p191 = por %p189, %p190
      %p192 = scmp.ne.s32.totalorder %s181, %s182
      %p193 = scmp.eq.s32.totalorder %s21, 0
      %p194 = por %p192, %p193
      %p195 = scmp.ne.s32.totalorder %s181, %s182
      %p196 = scmp.eq.s32.totalorder %s22, 1
      %p197 = por %p195, %p196
      %p199 = scmp.ne.s32.totalorder %s182, %s198
      %p200 = scmp.eq.s32.totalorder %s22, 0
      %p201 = por %p199, %p200
      %p202 = scmp.le.s32.totalorder 1, %s16
      %p203 = scmp.lt.s32.totalorder %s16, 3
      %p204 = pnand %p202, %p203
      %p205 = pneg %p204
      // Predicated region
      $region9: #{tpu_custom_call.1} parent=5 // pred_check
        _
      $region10: #{tpu_custom_call.1} parent=5 // pred_check_branch
        %207 = sbr.rel (%p204) target = $region12
      $region11: #{tpu_custom_call.1} parent=5 // pred_region
        %s208 = ssub.s32 %s16, 1
        // Predicated region
        $region13: #{tpu_custom_call.1} parent=11 // pred_check
          %p209 = pneg %p63
        $region14: #{tpu_custom_call.1} parent=11 // pred_check_branch
          %211 = sbr.rel (%p209) target = $region16
        $region15: #{tpu_custom_call.1} parent=11 // pred_region
          _
        $region16: #{tpu_custom_call.1} parent=11 // pred_fallthru
          _
        // Predicated region
        $region17: #{tpu_custom_call.1} parent=11 // pred_check
          %p212 = pneg %p84
        $region18: #{tpu_custom_call.1} parent=11 // pred_check_branch
          %214 = sbr.rel (%p212) target = $region20
        $region19: #{tpu_custom_call.1} parent=11 // pred_region
          _
        $region20: #{tpu_custom_call.1} parent=11 // pred_fallthru
          _
        // Predicated region
        $region21: #{tpu_custom_call.1} parent=11 // pred_check
          %p215 = pneg %p105
        $region22: #{tpu_custom_call.1} parent=11 // pred_check_branch
          %217 = sbr.rel (%p215) target = $region24
        $region23: #{tpu_custom_call.1} parent=11 // pred_region
          _
        $region24: #{tpu_custom_call.1} parent=11 // pred_fallthru
          _
        // Predicated region
        $region25: #{tpu_custom_call.1} parent=11 // pred_check
          %p218 = pneg %p126
        $region26: #{tpu_custom_call.1} parent=11 // pred_check_branch
          %220 = sbr.rel (%p218) target = $region28
        $region27: #{tpu_custom_call.1} parent=11 // pred_region
          _
        $region28: #{tpu_custom_call.1} parent=11 // pred_fallthru
          _
        // Predicated region
        $region29: #{tpu_custom_call.1} parent=11 // pred_check
          %p221 = pneg %p147
        $region30: #{tpu_custom_call.1} parent=11 // pred_check_branch
          %223 = sbr.rel (%p221) target = $region32
        $region31: #{tpu_custom_call.1} parent=11 // pred_region
          _
        $region32: #{tpu_custom_call.1} parent=11 // pred_fallthru
          _
        // Predicated region
        $region33: #{tpu_custom_call.1} parent=11 // pred_check
          %p224 = pneg %p168
        $region34: #{tpu_custom_call.1} parent=11 // pred_check_branch
          %226 = sbr.rel (%p224) target = $region36
        $region35: #{tpu_custom_call.1} parent=11 // pred_region
          _
        $region36: #{tpu_custom_call.1} parent=11 // pred_fallthru
          _
      $region12: #{tpu_custom_call.1} parent=5 // pred_fallthru
        _
      %p227 = scmp.lt.s32.totalorder %s16, 2
      // Predicated region
      $region37: #{tpu_custom_call.1} parent=5 // pred_check
        %p228 = pneg %p227
      $region38: #{tpu_custom_call.1} parent=5 // pred_check_branch
        %230 = sbr.rel (%p228) target = $region40
      $region39: #{tpu_custom_call.1} parent=5 // pred_region
        // Predicated region
        $region41: #{tpu_custom_call.1} parent=39 // pred_check
          %p231 = pneg %p36
        $region42: #{tpu_custom_call.1} parent=39 // pred_check_branch
          %233 = sbr.rel (%p231) target = $region44
        $region43: #{tpu_custom_call.1} parent=39 // pred_region
          %p234 = scmp.lt.s32.totalorder %s16, 1
          %s235 = scalar_select %p234, %s16, 1
          %s236 = smul.addr %s235, 2
          %s237 = smul.addr %s236, 4
          %s238 = scalar_lea.vmem %s0, %s237
        $region44: #{tpu_custom_call.1} parent=39 // pred_fallthru
          _
      $region40: #{tpu_custom_call.1} parent=5 // pred_fallthru
        _
      %p239 = scmp.le.s32.totalorder 1, %s16
      %p240 = scmp.lt.s32.totalorder %s16, 3
      %p241 = pnand %p239, %p240
      %p242 = pneg %p241
      // Predicated region
      $region45: #{tpu_custom_call.1} parent=5 // pred_check
        _
      $region46: #{tpu_custom_call.1} parent=5 // pred_check_branch
        %244 = sbr.rel (%p241) target = $region48
      $region47: #{tpu_custom_call.1} parent=5 // pred_region
        %s245 = ssub.s32 %s16, 1
        %p246 = scmp.lt.s32.totalorder %s21, 1
        %s247 = scalar_select %p246, %s21, 1
        %s248 = smul.addr %s247, 2
        %s249 = smul.addr %s248, 4
        %s250 = scalar_lea.vmem %s0, %s249
        %p251 = pneg %p42
        %p252 = pneg %p39
        %p253 = pneg %p63
        %p254 = pneg %p60
        %p255 = pneg %p84
        %p256 = pneg %p81
        %p257 = pneg %p105
        %p258 = pneg %p102
        %p259 = pneg %p126
        %p260 = pneg %p123
        %p261 = pneg %p147
        %p262 = pneg %p144
        %p263 = pneg %p168
        %p264 = pneg %p165
        %p265 = pneg %p194
        %p266 = pneg %p191
        %s267 = sand.u32 %s181, 1
        %s268 = scalar_lea.sflag [#allocation3], %s267
        %s269 = sand.u32 %s181, 1
        %s270 = smul.addr %s269, 8
        %s271 = scalar_lea.vmem [#allocation2], %s270
        %p272 = scmp.lt.s32.totalorder %s21, 1
        %s273 = scalar_select %p272, %s21, 1
        %s274 = smul.addr %s273, 2
        %s275 = smul.addr %s274, 4
        %s276 = scalar_lea.vmem %s0, %s275
        %v277 = vld [vmem:[%s276] sm:$0xff]
        %v279 = vcombine.high %v277, %v277
        %vm281 = vcmask 1043456
        %v282 = vsel %vm281, %v277, 0.0
        %v283 = vsel %vm281, %v279, 0.0
        %v284 = vadd.f32 %v282, %v283
        %285 = vadd.xlane.f32.xlu0 %v284
        %v286 = vpop.xlane.xlu0 %285
        %v287 = vmul.f32 %v286, 0.00390625
        %v288 = vld [vmem:[%s3] sm:$0xf]
        %v289 = vmul.f32 %v288, %v287
        %vm290 = vcmask 11264
        %v291 = vsel %vm290, %v289, 0.0
        %v292 = vrot.slane %v291, 4
        %v293 = vadd.f32 %v291, %v292
        %v294 = vrot.slane %v293, 2
        %v295 = vadd.f32 %v293, %v294
        %v296 = vrot.slane %v295, 1
        %v297 = vadd.f32 %v295, %v296
        %v298 = vld [vmem:[%s4] sm:$0x1]
        %v299 = vadd.f32 %v297, %v298
        %v300 = vmax.f32 %v299, 0.0
        %v301 = vld [vmem:[%s5] sm:$0xf]
        %v302 = vlaneseq
        %v303 = vshrl.u32 %v302, 7
        %v304 = vsub.s32 0, %v303
        %v305 = vrot.slane %v300, %v304
        %v306 = vmul.f32 %v301, %v305
        %v307 = vsel %vm290, %v306, 0.0
        %308 = vadd.xlane.f32.xlu0 %v307
        %v309 = vpop.xlane.xlu0 %308
        %v310 = vld [vmem:[%s6] sm:$0xf]
        %v311 = vadd.f32 %v309, %v310
        %v312 = vsub.f32 0.0, %v311
        %v313 = vmul.f32 %v312, 1.442695
        %v314 = vpow.pop %v313
        %v315 = vadd.f32 %v314, 1.0
        %v316 = vrcp.pop %v315
        %v317 = vmul.f32 1.0, %v316
        %v318 = vld [vmem:[%s1] sm:$0xf]
        %320 = vset.pattern.permute.xlu0 0
        %321 = vperm.xlu0 %320, %v318
        %v322 = vpop.permute.xlu0 %321
        %v324 = vlaneseq
        %v325 = vshrl.u32 %v324, 7
        %v326 = vsub.s32 0, %v325
        %v327 = vrot.slane %v277, %v326
        %v328 = vlaneseq
        %v329 = vshrl.u32 %v328, 7
        %v330 = vsub.s32 4, %v329
        %v331 = vrot.slane %v277, %v330
        %v334 = vlaneseq
        %v335 = vshrl.u32 %v334, 7
        %v336 = vsub.s32 0, %v335
        %v337 = vrot.slane %v327, %v336
        %v338 = vlaneseq
        %v339 = vshrl.u32 %v338, 7
        %v340 = vsub.s32 0, %v339
        %v341 = vrot.slane %v331, %v340
        %v342 = vmul.f32 %v322, %v337
        %v343 = vmul.f32 %v322, %v341
        %v344 = vadd.f32 %v342, 0.0
        %v345 = vadd.f32 %v343, 0.0
        %346 = vset.pattern.permute.xlu0 1
        %347 = vperm.xlu0 %346, %v318
        %v348 = vpop.permute.xlu0 %347
        %v350 = vlaneseq
        %v351 = vshrl.u32 %v350, 7
        %v352 = vsub.s32 1, %v351
        %v353 = vrot.slane %v277, %v352
        %v354 = vlaneseq
        %v355 = vshrl.u32 %v354, 7
        %v356 = vsub.s32 5, %v355
        %v357 = vrot.slane %v277, %v356
        %v360 = vlaneseq
        %v361 = vshrl.u32 %v360, 7
        %v362 = vsub.s32 1, %v361
        %v363 = vrot.slane %v353, %v362
        %v364 = vlaneseq
        %v365 = vshrl.u32 %v364, 7
        %v366 = vsub.s32 1, %v365
        %v367 = vrot.slane %v357, %v366
        %v368 = vmul.f32 %v348, %v363
        %v369 = vmul.f32 %v348, %v367
        %v370 = vadd.f32 %v344, %v368
        %v371 = vadd.f32 %v345, %v369
        %372 = vset.pattern.permute.xlu0 2
        %373 = vperm.xlu0 %372, %v318
        %v374 = vpop.permute.xlu0 %373
        %v376 = vlaneseq
        %v377 = vshrl.u32 %v376, 7
        %v378 = vsub.s32 2, %v377
        %v379 = vrot.slane %v277, %v378
        %v380 = vlaneseq
        %v381 = vshrl.u32 %v380, 7
        %v382 = vsub.s32 6, %v381
        %v383 = vrot.slane %v277, %v382
        %v386 = vlaneseq
        %v387 = vshrl.u32 %v386, 7
        %v388 = vsub.s32 2, %v387
        %v389 = vrot.slane %v379, %v388
        %v390 = vlaneseq
        %v391 = vshrl.u32 %v390, 7
        %v392 = vsub.s32 2, %v391
        %v393 = vrot.slane %v383, %v392
        %v394 = vmul.f32 %v374, %v389
        %v395 = vmul.f32 %v374, %v393
        %v396 = vadd.f32 %v370, %v394
        %v397 = vadd.f32 %v371, %v395
        %398 = vset.pattern.permute.xlu0 3
        %399 = vperm.xlu0 %398, %v318
        %v400 = vpop.permute.xlu0 %399
        %v402 = vlaneseq
        %v403 = vshrl.u32 %v402, 7
        %v404 = vsub.s32 3, %v403
        %v405 = vrot.slane %v277, %v404
        %v406 = vlaneseq
        %v407 = vshrl.u32 %v406, 7
        %v408 = vsub.s32 7, %v407
        %v409 = vrot.slane %v277, %v408
        %v412 = vlaneseq
        %v413 = vshrl.u32 %v412, 7
        %v414 = vsub.s32 3, %v413
        %v415 = vrot.slane %v405, %v414
        %v416 = vlaneseq
        %v417 = vshrl.u32 %v416, 7
        %v418 = vsub.s32 3, %v417
        %v419 = vrot.slane %v409, %v418
        %v420 = vmul.f32 %v400, %v415
        %v421 = vmul.f32 %v400, %v419
        %v422 = vadd.f32 %v396, %v420
        %v423 = vadd.f32 %v397, %v421
        %v424 = vld [vmem:[%s2] sm:$0xf]
        %426 = vset.pattern.permute.xlu0 0
        %427 = vperm.xlu0 %426, %v424
        %v428 = vpop.permute.xlu0 %427
        %v430 = vadd.f32 %v422, %v428
        %v431 = vadd.f32 %v423, %v428
        %v432 = vsub.f32 0.0, %v430
        %v433 = vsub.f32 0.0, %v431
        %v434 = vmul.f32 %v432, 1.442695
        %v435 = vpow.pop %v434
        %v436 = vmul.f32 %v433, 1.442695
        %v437 = vpow.pop %v436
        %v438 = vadd.f32 %v435, 1.0
        %v439 = vadd.f32 %v437, 1.0
        %v440 = vrcp.pop %v438
        %v441 = vmul.f32 1.0, %v440
        %v442 = vrcp.pop %v439
        %v443 = vmul.f32 1.0, %v442
        %445 = vset.pattern.permute.xlu0 0
        %446 = vperm.xlu0 %445, %v317
        %v447 = vpop.permute.xlu0 %446
        %v449 = vadd.f32 %v441, %v447
        %v450 = vadd.f32 %v443, %v447
        %v453 = vcombine.low %v449, %v450
        %v455 = vmul.f32 %v277, %v453
        %456 = vst [vmem:[%s271] sm:$0xff] %v455
        %s457 = sand.u32 %s181, 1
        %s458 = scalar_lea.sflag [#allocation3], %s457
        %s459 = sand.u32 %s181, 1
        %s460 = smul.addr %s459, 8
        %s461 = scalar_lea.vmem [#allocation2], %s460
        // Predicated region
        $region49: #{tpu_custom_call.1} parent=47 // pred_check
          %p462 = pneg %p191
        $region50: #{tpu_custom_call.1} parent=47 // pred_check_branch
          %464 = sbr.rel (%p462) target = $region52
        $region51: #{tpu_custom_call.1} parent=47 // pred_region
          %s466 = ssub.s32 128, 128
          %467 = vsyncadd %s458, %s466
          %s468 = smul.addr %s21, 2
          %s469 = smul.addr %s468, 64
          %s470 = scalar_lea.hbm %s7, %s469
          %s472 = sshll.u32 %s461, 4
          %s473 = int_to_ptr.vmem [resolvable:$true] %s472
          %475 = dma.vmem_to_hbm [thread:$0]  %s473, 128, %s470, %s458
        $region52: #{tpu_custom_call.1} parent=47 // pred_fallthru
          _
      $region48: #{tpu_custom_call.1} parent=5 // pred_fallthru
        _
      %p476 = scmp.le.s32.totalorder 2, %s16
      // Predicated region
      $region53: #{tpu_custom_call.1} parent=5 // pred_check
        %p477 = pneg %p476
      $region54: #{tpu_custom_call.1} parent=5 // pred_check_branch
        %479 = sbr.rel (%p477) target = $region56
      $region55: #{tpu_custom_call.1} parent=5 // pred_region
        %s480 = ssub.s32 %s16, 2
        // Predicated region
        $region57: #{tpu_custom_call.1} parent=55 // pred_check
          %p481 = pneg %p197
        $region58: #{tpu_custom_call.1} parent=55 // pred_check_branch
          %483 = sbr.rel (%p481) target = $region60
        $region59: #{tpu_custom_call.1} parent=55 // pred_region
          %s484 = sand.u32 %s182, 1
          %s485 = scalar_lea.sflag [#allocation3], %s484
          %s486 = sand.u32 %s182, 1
          %s487 = smul.addr %s486, 8
          %s488 = scalar_lea.vmem [#allocation2], %s487
          %489 = dma.done %s485, 128
        $region60: #{tpu_custom_call.1} parent=55 // pred_fallthru
          _
      $region56: #{tpu_custom_call.1} parent=5 // pred_fallthru
        _
    $region6: #{tpu_custom_call.1} parent=1 // loop_footer
      %s20 = sadd.s32 1, %s16
    $region7: #{tpu_custom_call.1} parent=1 // loop_footer_branch
      %15 = sbr.rel target = $region3
    $region8: #{tpu_custom_call.1} parent=1 // loop_exit
      _
    %490 = vsyncpa [#allocation3], 1
    %s491 = scalar_lea.sflag [#allocation3], 1
    %492 = vsyncpa %s491, 1

</llo_original>
